<compile_context>
chip_gen: v6e
topology: v6e:2x2x1
jax: 0.10.0
libtpu: 0.0.40
codegen_flags: <defaults>
</compile_context>

<pallas_src>
import functools

import numpy as np
import jax
import jax.numpy as jnp
from jax import lax
from jax.experimental import pallas as pl
from jax.experimental.pallas import tpu as pltpu


# ---------------------------------------------------------------------------
# window construction (numpy, deterministic, same as the PyTorch module)
# ---------------------------------------------------------------------------
def make_window(seed, static_out=True):
    if not isinstance(seed, (tuple, list)):
        raise ValueError('seed must be tuple or list')
    if isinstance(seed[0], (tuple, list)):
        if static_out:
            seed = [[1]] + list(seed)
        max_len = max([len(coefficients) for coefficients in seed])
        if max_len % 2 == 0:
            max_len += 1
        window = []
        for coefficients in seed:
            diff = max_len - len(coefficients)
            if diff % 2 == 0:
                left_pad = diff // 2
                right_pad = diff // 2
            else:
                left_pad = (diff - 1) // 2
                right_pad = (diff + 1) // 2
            window.append([0] * left_pad + list(coefficients) + [0] * right_pad)
    else:
        max_len = max(seed) * 2 + 1
        assert 1 <= np.min(seed), 'width must be greater than zero'
        window = []
        if static_out:
            w = np.zeros(max_len)
            w[(max_len - 1) // 2] = 1
            window.append(w)
        if True:
            n = seed[0]
            z = 1 / (n * (n + 1) * (2 * n + 1) / 3)
            j = np.arange(-n, n + 1)
            pad_width = (max_len - (n * 2 + 1)) // 2
            window.append(np.pad(j * z, pad_width))
        if 2 <= len(seed):
            n = seed[1]
            a0 = 2 * n + 1
            a1 = a0 * n * (n + 1) / 3
            a2 = a1 * (3 * n * n + 3 * n - 1) / 5
            z = 1 / (2 * (a2 * a0 - a1 * a1))
            j = np.arange(-n, n + 1)
            pad_width = (max_len - (n * 2 + 1)) // 2
            window.append(np.pad((a0 * j * j - a1) * z, pad_width))
        if 3 <= len(seed):
            raise ValueError('3rd order regression is not supported')
    window = np.asarray(window, dtype=np.float64)
    return window


def _vmem_capacity_bytes():
    try:
        return int(pltpu.get_tpu_info().vmem_capacity_bytes)
    except Exception:
        return 64 * 1024 * 1024        # conservative (v7x per-TC VMEM)


# ---------------------------------------------------------------------------
# Pallas Delta implementation
# ---------------------------------------------------------------------------
def make_delta(seed=[[-0.5, 0, 0.5], [1, -2, 1]], static_out=True,
               time_tile=None, out_dtype=None):
    """Returns (delta_fn, window). delta_fn(x) mimics Delta.forward().

    time_tile : optional time-axis tile size (rows).
    out_dtype : optional output dtype (e.g. jnp.bfloat16 on v5e to cut the
                H-times-larger output HBM traffic); accumulation stays f32.
    """
    window = make_window(seed, static_out=static_out)           # (H, W) float64
    H, W = window.shape
    P = (W - 1) // 2                      # stencil halo (pad) in rows
    P8 = ((P + 7) // 8) * 8               # sublane-aligned halo span
    HP = max(8, P8)                       # halo rows shipped per tile / side
    coeffs = [[float(window[h, w]) for w in range(W)] for h in range(H)]
    nnz = int(np.count_nonzero(window))

    def _strip_rows_cap(D):
        # Keep the per-strip working set ((R + 2*P8) input rows + H f32
        # accumulators + a shifted temp) within ~half of the 256 KiB vreg file
        # so nothing spills to VMEM.
        budget = 112 * 1024
        r = budget // max(1, 4 * D * (H + 2))
        return int(max(8, min(64, (r // 8) * 8)))

    def _pick_time_tile(B, T, D, in_b, out_b):
        rcap = _strip_rows_cap(D)
        if time_tile is not None:
            tt = int(min(time_tile, T))
            if tt < T:                    # tiled blocks must be sublane-aligned
                tt = max(8, (tt // 8) * 8)
            return tt
        # dtype- and generation-aware per-grid-step VMEM budget:
        # input dbl-buf + ext scratch (3*in) + output dbl-buf (2*H*out).
        cap = _vmem_capacity_bytes()
        budget = int(min(28 * 1024 * 1024, max(12 * 1024 * 1024, cap // 3)))
        per_row = D * (3 * in_b + 2 * H * out_b) + 64
        rows = budget // max(per_row, 1)
        rows = int(max(rcap, min(rows, 4096)))
        rows = (rows // rcap) * rcap
        if B == 1:
            # guarantee >= 2 grid steps so both TensorCores (v7x) get work
            # and the input/output DMAs actually pipeline.
            half = max(8, ((T + 1) // 2 // 8) * 8)
            rows = min(rows, half)
        if T <= rows:
            return T
        return rows

    # ------------------------------------------------------------------
    # strip-loop kernel (T_tile is a multiple of 8)
    # ------------------------------------------------------------------
    def _kernel_strip(T, T_tile, D, R, ragged, per_h_store,
                      x_ref, lh_ref, rh_ref, o_ref, ext_ref):
        # x_ref : (1, T_tile, D)    current time tile
        # lh_ref: (1, 1, HP, D)     left halo rows (edge-replicated at start)
        # rh_ref: (1, 1, HP, D)     right halo rows (edge-replicated at end)
        # o_ref : (1, T_tile, H*D)
        # ext_ref: (T_tile + 2*HP, D) VMEM scratch, sublane-aligned layout

        # 1) build the aligned extended buffer: [left halo | tile | right halo]
        ext_ref[0:HP, :] = lh_ref[0, 0]
        ext_ref[HP + T_tile:HP + T_tile + HP, :] = rh_ref[0, 0]
        xb = x_ref[0]
        if ragged:
            # Rows past the end of the sequence must read as the final valid
            # row (ReplicationPad2d); compiled in only when T % T_tile != 0.
            t = pl.program_id(1)
            n_valid = T - t * T_tile            # > T_tile on all but last tile
            last_idx = jnp.clip(n_valid - 1, 0, T_tile - 1)
            last_row = x_ref[0, pl.ds(last_idx, 1), :]
            row_ids = lax.broadcasted_iota(jnp.int32, (T_tile, 1), 0)
            xb = jnp.where(row_ids >= n_valid, last_row, xb)
        ext_ref[HP:HP + T_tile, :] = xb

        # 2) strip loop: accumulators live in vregs, aligned strip loads
        S = T_tile // R
        span = R + 2 * P8
        off0 = P8 - P

        def strip(s):
            if isinstance(s, int):
                base = s * R
                start = base + (HP - P8)
            else:
                base = pl.multiple_of(s * R, 8)
                start = pl.multiple_of(s * R + (HP - P8), 8)
            rows = ext_ref[pl.ds(start, span), :].astype(jnp.float32)
            outs = []
            for h in range(H):
                acc = None
                for w in range(W):
                    c = coeffs[h][w]
                    if c == 0.0:
                        continue
                    xs = rows[off0 + w: off0 + w + R, :]     # in-register slice
                    term = xs if c == 1.0 else c * xs
                    acc = term if acc is None else acc + term
                if acc is None:
                    acc = jnp.zeros((R, D), jnp.float32)
                outs.append(acc.astype(o_ref.dtype))
            if per_h_store:            # lane-aligned per-component stores
                for h in range(H):
                    o_ref[0, pl.ds(base, R), h * D:(h + 1) * D] = outs[h]
            else:                      # one wide lane-dense store per strip
                o_ref[0, pl.ds(base, R), :] = jnp.concatenate(outs, axis=-1)

        U = max(1, min(S, -(-64 // R)))          # ~64 rows of work per body
        n_chunks = S // U
        if n_chunks > 1:
            def chunk(ci, carry):
                for u in range(U):
                    strip(ci * U + u)
                return carry
            lax.fori_loop(0, n_chunks, chunk, 0)
            tail = n_chunks * U
        else:
            tail = 0
        for s in range(tail, S):                 # static remainder strips
            strip(s)

    # ------------------------------------------------------------------
    # whole-tile static kernel (only used when T_tile == T and T % 8 != 0)
    # ------------------------------------------------------------------
    def _kernel_full(T_tile, D, per_h_store, x_ref, lh_ref, rh_ref, o_ref):
        xb = x_ref[0].astype(jnp.float32)
        if P > 0:
            ext = jnp.concatenate(
                [lh_ref[0, 0, HP - P:HP, :].astype(jnp.float32),
                 xb,
                 rh_ref[0, 0, 0:P, :].astype(jnp.float32)], axis=0)
        else:
            ext = xb
        outs = []
        for h in range(H):
            acc = None
            for w in range(W):
                c = coeffs[h][w]
                if c == 0.0:
                    continue
                xs = ext[w:w + T_tile, :]
                term = xs if c == 1.0 else c * xs
                acc = term if acc is None else acc + term
            if acc is None:
                acc = jnp.zeros((T_tile, D), jnp.float32)
            outs.append(acc.astype(o_ref.dtype))
        if per_h_store:
            for h in range(H):
                o_ref[0, :, h * D:(h + 1) * D] = outs[h]
        else:
            o_ref[0] = jnp.concatenate(outs, axis=-1)

    # ------------------------------------------------------------------
    # wrapper
    # ------------------------------------------------------------------
    def delta(x):
        squeeze = (x.ndim == 2)
        if squeeze:
            x = x[None]
        assert x.ndim == 3, 'Input must be 3D tensor'
        B, T, D = x.shape
        odtype = x.dtype if out_dtype is None else out_dtype
        in_b = int(np.dtype(x.dtype).itemsize)
        out_b = int(np.dtype(odtype).itemsize)

        T_tile = _pick_time_tile(B, T, D, in_b, out_b)
        nT = -(-T // T_tile)

        # Tiny sublane-aligned halo gathers (HP rows per tile per side);
        # clipping implements the edge replication at the sequence boundaries.
        base = np.arange(nT, dtype=np.int64)[:, None] * T_tile
        j = np.arange(HP, dtype=np.int64)[None, :]
        jl = np.clip(base - HP + j, 0, T - 1).reshape(-1)
        jr = np.clip(base + T_tile + j, 0, T - 1).reshape(-1)
        lh = x[:, jl, :].reshape(B, nT, HP, D)
        rh = x[:, jr, :].reshape(B, nT, HP, D)

        per_h_store = (D % 128 == 0)
        strip_path = (T_tile % 8 == 0)

        if strip_path:
            rcap = min(_strip_rows_cap(D), T_tile)
            R = 8
            for r in range(rcap, 7, -8):          # largest 8-multiple divisor
                if T_tile % r == 0:
                    R = r
                    break
            ragged = (T % T_tile != 0)
            kernel = functools.partial(_kernel_strip, T, T_tile, D, R,
                                       ragged, per_h_store)
            scratch = [pltpu.VMEM((T_tile + 2 * HP, D), x.dtype)]
        else:
            kernel = functools.partial(_kernel_full, T_tile, D, per_h_store)
            scratch = []

        # Explicit, generation-safe VMEM limit derived from the actual block
        # footprint (input/halo/output double buffers + aligned ext scratch).
        blk_bytes = (2 * T_tile * D * in_b
                     + 2 * T_tile * H * D * out_b
                     + (T_tile + 2 * HP) * D * in_b
                     + 4 * HP * D * in_b)
        cap = _vmem_capacity_bytes()
        vmem_limit = int(min(max(32 * 1024 * 1024, blk_bytes * 5 // 4),
                             max(cap - 8 * 1024 * 1024, 16 * 1024 * 1024)))

        cost = pl.CostEstimate(
            flops=int(2 * B * T * D * nnz),
            transcendentals=0,
            bytes_accessed=int(in_b * B * T * D
                               + out_b * B * T * H * D
                               + 2 * in_b * B * nT * HP * D),
        )

        out = pl.pallas_call(
            kernel,
            out_shape=jax.ShapeDtypeStruct((B, T, H * D), odtype),
            grid=(B, nT),
            in_specs=[
                pl.BlockSpec((1, T_tile, D), lambda b, t: (b, t, 0)),
                pl.BlockSpec((1, 1, HP, D), lambda b, t: (b, t, 0, 0)),
                pl.BlockSpec((1, 1, HP, D), lambda b, t: (b, t, 0, 0)),
            ],
            out_specs=pl.BlockSpec((1, T_tile, H * D), lambda b, t: (b, t, 0)),
            scratch_shapes=scratch,
            compiler_params=pltpu.CompilerParams(
                dimension_semantics=("parallel", "parallel"),
                vmem_limit_bytes=vmem_limit,
            ),
            cost_estimate=cost,
        )(x, lh, rh)

        if squeeze:
            out = out[0]
        return out

    return delta, window


# ---------------------------------------------------------------------------
# reference (pure JAX) for verification
# ---------------------------------------------------------------------------
def delta_reference(x, window):
    H, W = window.shape
    pad = (W - 1) // 2
    squeeze = (x.ndim == 2)
    if squeeze:
        x = x[None]
    B, T, D = x.shape
    if pad > 0:
        xp = jnp.concatenate(
            [jnp.repeat(x[:, :1, :], pad, axis=1),
             x,
             jnp.repeat(x[:, -1:, :], pad, axis=1)],
            axis=1)
    else:
        xp = x
    comps = []
    for h in range(H):
        acc = jnp.zeros((B, T, D), jnp.float32)
        for w in range(W):
            acc = acc + float(window[h, w]) * xp[:, w:w + T, :]
        comps.append(acc)
    y = jnp.stack(comps, axis=2).reshape(B, T, H * D)
    if squeeze:
        y = y[0]
    return y


if __name__ == "__main__":
    key = jax.random.PRNGKey(0)

    # 1) small shapes consistent with the module: (B, T, D) = (2, 16, 8)
    B, T, D = 2, 16, 8
    x = jax.random.normal(key, (B, T, D), dtype=jnp.float32)
    delta_fn, window = make_delta(seed=[[-0.5, 0, 0.5], [1, -2, 1]],
                                  static_out=True)
    y = delta_fn(x)
    jax.block_until_ready(y)
    y_ref = delta_reference(x, window)
    assert y.shape == (B, T, window.shape[0] * D), y.shape
    assert jnp.allclose(y, y_ref, atol=1e-5, rtol=1e-5), "mismatch (3D path)"

    # 2D (T, D) path
    y2 = delta_fn(x[0])
    jax.block_until_ready(y2)
    assert jnp.allclose(y2, y_ref[0], atol=1e-5, rtol=1e-5), "mismatch (2D path)"

    # 2) tiled time axis with a ragged last tile (strip path, wide store)
    B2, T2, D2 = 2, 72, 8
    x2 = jax.random.normal(jax.random.PRNGKey(1), (B2, T2, D2), dtype=jnp.float32)
    delta_tiled, _ = make_delta(time_tile=16)
    y3 = delta_tiled(x2)
    jax.block_until_ready(y3)
    assert jnp.allclose(y3, delta_reference(x2, window), atol=1e-5, rtol=1e-5), \
        "mismatch (tiled ragged path)"

    # 3) lane-dense feature dim (D multiple of 128), per-component stores
    B3, T3, D3 = 1, 128, 128
    x3 = jax.random.normal(jax.random.PRNGKey(2), (B3, T3, D3), dtype=jnp.float32)
    delta_wide, _ = make_delta(time_tile=32)
    y4 = delta_wide(x3)
    jax.block_until_ready(y4)
    assert jnp.allclose(y4, delta_reference(x3, window), atol=1e-5, rtol=1e-5), \
        "mismatch (lane-dense tiled path)"

    # 4) fori_loop strip chunks + ragged last tile + per-component stores
    B4, T4, D4 = 1, 272, 256
    x4 = jax.random.normal(jax.random.PRNGKey(3), (B4, T4, D4), dtype=jnp.float32)
    delta_chunks, _ = make_delta(time_tile=128)
    y5 = delta_chunks(x4)
    jax.block_until_ready(y5)
    assert jnp.allclose(y5, delta_reference(x4, window), atol=1e-5, rtol=1e-5), \
        "mismatch (fori-loop strip path)"

    # 5) auto time-tiling for a single-batch sequence (>= 2 grid steps)
    B5, T5, D5 = 1, 256, 16
    x5 = jax.random.normal(jax.random.PRNGKey(4), (B5, T5, D5), dtype=jnp.float32)
    delta_auto, _ = make_delta()
    y6 = delta_auto(x5)
    jax.block_until_ready(y6)
    assert jnp.allclose(y6, delta_reference(x5, window), atol=1e-5, rtol=1e-5), \
        "mismatch (auto-tiled single-batch path)"

    # 6) docstring example from the PyTorch module (small static path)
    xd = jnp.arange(1.0, 9.0, dtype=jnp.float32).reshape(1, 4, 2)
    delta_doc, _ = make_delta(seed=[[-0.5, 0], [0, 0, 0.5]])
    yd = delta_doc(xd)
    jax.block_until_ready(yd)
    expected = jnp.array([[[1., 2., -0.5, -1., 1.5, 2.],
                           [3., 4., -0.5, -1., 2.5, 3.],
                           [5., 6., -1.5, -2., 3.5, 4.],
                           [7., 8., -2.5, -3., 3.5, 4.]]], dtype=jnp.float32)
    assert jnp.allclose(yd, expected, atol=1e-5, rtol=1e-5), "mismatch (docstring example)"

    print("KERNEL_OK")
</pallas_src>

<mosaic_0001>
module attributes {stable_mosaic.version = 11 : i64} {
  func.func @_kernel_strip(%arg0: i32, %arg1: i32, %arg2: memref<1x16x8xf32, #tpu.memory_space<vmem>>, %arg3: memref<1x1x8x8xf32, #tpu.memory_space<vmem>>, %arg4: memref<1x1x8x8xf32, #tpu.memory_space<vmem>>, %arg5: memref<1x16x24xf32, #tpu.memory_space<vmem>>, %arg6: memref<32x8xf32, #tpu.memory_space<vmem>>) attributes {dimension_semantics = [#tpu.dimension_semantics<parallel>, #tpu.dimension_semantics<parallel>], iteration_bounds = array<i64: 2, 1>, scalar_prefetch = 0 : i64, scratch_operands = 1 : i64, tpu.core_type = #tpu.core_type<tc>, window_params = [{transform_indices = @transform_0, window_bounds = array<i64: 1, 16, 8>}, {transform_indices = @transform_1, window_bounds = array<i64: 1, 1, 8, 8>}, {transform_indices = @transform_2, window_bounds = array<i64: 1, 1, 8, 8>}, {transform_indices = @transform_3, window_bounds = array<i64: 1, 16, 24>}]} {
    %c0 = arith.constant 0 : index
    %c0_0 = arith.constant 0 : index
    %c0_1 = arith.constant 0 : index
    %c0_2 = arith.constant 0 : index
    %0 = vector.load %arg3[%c0, %c0_0, %c0_1, %c0_2] : memref<1x1x8x8xf32, #tpu.memory_space<vmem>>, vector<1x1x8x8xf32>
    %1 = vector.shape_cast %0 : vector<1x1x8x8xf32> to vector<8x8xf32>
    %c0_3 = arith.constant 0 : index
    %c0_4 = arith.constant 0 : index
    %2 = vector.load %arg6[%c0_3, %c0_4] : memref<32x8xf32, #tpu.memory_space<vmem>>, vector<8x8xf32>
    tpu.vector_store %arg6[%c0_3, %c0_4], %1 {strides = array<i32>} : memref<32x8xf32, #tpu.memory_space<vmem>>, vector<8x8xf32>,
    %c0_5 = arith.constant 0 : index
    %c0_6 = arith.constant 0 : index
    %c0_7 = arith.constant 0 : index
    %c0_8 = arith.constant 0 : index
    %3 = vector.load %arg4[%c0_5, %c0_6, %c0_7, %c0_8] : memref<1x1x8x8xf32, #tpu.memory_space<vmem>>, vector<1x1x8x8xf32>
    %4 = vector.shape_cast %3 : vector<1x1x8x8xf32> to vector<8x8xf32>
    %c24 = arith.constant 24 : index
    %c0_9 = arith.constant 0 : index
    %5 = vector.load %arg6[%c24, %c0_9] : memref<32x8xf32, #tpu.memory_space<vmem>>, vector<8x8xf32>
    tpu.vector_store %arg6[%c24, %c0_9], %4 {strides = array<i32>} : memref<32x8xf32, #tpu.memory_space<vmem>>, vector<8x8xf32>,
    %c0_10 = arith.constant 0 : index
    %c0_11 = arith.constant 0 : index
    %c0_12 = arith.constant 0 : index
    %6 = vector.load %arg2[%c0_10, %c0_11, %c0_12] : memref<1x16x8xf32, #tpu.memory_space<vmem>>, vector<1x16x8xf32>
    %7 = vector.shape_cast %6 : vector<1x16x8xf32> to vector<16x8xf32>
    %c8 = arith.constant 8 : index
    %c0_13 = arith.constant 0 : index
    %8 = vector.load %arg6[%c8, %c0_13] : memref<32x8xf32, #tpu.memory_space<vmem>>, vector<16x8xf32>
    tpu.vector_store %arg6[%c8, %c0_13], %7 {strides = array<i32>} : memref<32x8xf32, #tpu.memory_space<vmem>>, vector<16x8xf32>,
    %c0_14 = arith.constant 0 : index
    %c0_15 = arith.constant 0 : index
    %9 = vector.load %arg6[%c0_14, %c0_15] : memref<32x8xf32, #tpu.memory_space<vmem>>, vector<32x8xf32>
    %10 = vector.extract_strided_slice %9 {offsets = [8, 0], sizes = [16, 8], strides = [1, 1]} : vector<32x8xf32> to vector<16x8xf32>
    %11 = vector.extract_strided_slice %9 {offsets = [7, 0], sizes = [16, 8], strides = [1, 1]} : vector<32x8xf32> to vector<16x8xf32>
    %cst = arith.constant -5.000000e-01 : f32
    %12 = vector.broadcast %cst : f32 to vector<16x8xf32>
    %13 = arith.mulf %12, %11 : vector<16x8xf32>
    %14 = vector.extract_strided_slice %9 {offsets = [9, 0], sizes = [16, 8], strides = [1, 1]} : vector<32x8xf32> to vector<16x8xf32>
    %cst_16 = arith.constant 5.000000e-01 : f32
    %15 = vector.broadcast %cst_16 : f32 to vector<16x8xf32>
    %16 = arith.mulf %15, %14 : vector<16x8xf32>
    %17 = arith.addf %13, %16 : vector<16x8xf32>
    %18 = vector.extract_strided_slice %9 {offsets = [7, 0], sizes = [16, 8], strides = [1, 1]} : vector<32x8xf32> to vector<16x8xf32>
    %19 = vector.extract_strided_slice %9 {offsets = [8, 0], sizes = [16, 8], strides = [1, 1]} : vector<32x8xf32> to vector<16x8xf32>
    %cst_17 = arith.constant -2.000000e+00 : f32
    %20 = vector.broadcast %cst_17 : f32 to vector<16x8xf32>
    %21 = arith.mulf %20, %19 : vector<16x8xf32>
    %22 = arith.addf %18, %21 : vector<16x8xf32>
    %23 = vector.extract_strided_slice %9 {offsets = [9, 0], sizes = [16, 8], strides = [1, 1]} : vector<32x8xf32> to vector<16x8xf32>
    %24 = arith.addf %22, %23 : vector<16x8xf32>
    %25 = tpu.concatenate %10, %17, %24 in 1 : vector<16x8xf32>, vector<16x8xf32>, vector<16x8xf32> -> vector<16x24xf32>
    %c0_18 = arith.constant 0 : index
    %c0_19 = arith.constant 0 : index
    %c0_20 = arith.constant 0 : index
    %26 = vector.load %arg5[%c0_18, %c0_19, %c0_20] : memref<1x16x24xf32, #tpu.memory_space<vmem>>, vector<1x16x24xf32>
    %27 = vector.shape_cast %26 : vector<1x16x24xf32> to vector<16x24xf32>
    %28 = vector.shape_cast %25 : vector<16x24xf32> to vector<1x16x24xf32>
    tpu.vector_store %arg5[%c0_18, %c0_19, %c0_20], %28 {strides = array<i32>} : memref<1x16x24xf32, #tpu.memory_space<vmem>>, vector<1x16x24xf32>,
    return
  }
  func.func @transform_0(%arg0: i32, %arg1: i32) -> (i32, i32, i32) {
    %c0_i32 = arith.constant 0 : i32
    %c0_i32_0 = arith.constant 0 : i32
    return %arg0, %arg1, %c0_i32 : i32, i32, i32
  }
  func.func @transform_1(%arg0: i32, %arg1: i32) -> (i32, i32, i32, i32) {
    %c0_i32 = arith.constant 0 : i32
    %c0_i32_0 = arith.constant 0 : i32
    %c0_i32_1 = arith.constant 0 : i32
    return %arg0, %arg1, %c0_i32, %c0_i32_0 : i32, i32, i32, i32
  }
  func.func @transform_2(%arg0: i32, %arg1: i32) -> (i32, i32, i32, i32) {
    %c0_i32 = arith.constant 0 : i32
    %c0_i32_0 = arith.constant 0 : i32
    %c0_i32_1 = arith.constant 0 : i32
    return %arg0, %arg1, %c0_i32, %c0_i32_0 : i32, i32, i32, i32
  }
  func.func @transform_3(%arg0: i32, %arg1: i32) -> (i32, i32, i32) {
    %c0_i32 = arith.constant 0 : i32
    %c0_i32_0 = arith.constant 0 : i32
    return %arg0, %arg1, %c0_i32 : i32, i32, i32
  }
}

</mosaic_0001>

<llo_original>
// kernel: tpu_custom_call.1
$region0: #{tpu_custom_call.1}
  #allocation0 [shape = 'u32[]', space=smem, size = 0x4, offset = 0x4, fixed_abs, tag = 'smem constant byte address 0x4 - core index']
  #allocation1 [shape = 'u32[144,128]{1,0:T(1,128)}', space=vmem, size = 0x12000, scoped, tag = 'internal scratch']
  #allocation2 [shape = 'f32[32,8]{1,0:T(8,128)}', space=vmem, size = 0x4000, scoped, tag = 'scratch operand']
  %s0 = inlined_call_operand.vmem [shape: f32[2,16,8], index: 0, kind: input, shape index: {}]
  %s1 = inlined_call_operand.vmem [shape: f32[2,1,8,8], index: 1, kind: input, shape index: {}]
  %s2 = inlined_call_operand.vmem [shape: f32[2,1,8,8], index: 2, kind: input, shape index: {}]
  %s3 = inlined_call_operand.hbm [shape: f32[2,16,24], index: 3, kind: output, shape index: {}]
  %s4 = sld [smem:[#allocation0]]
  $region45: #{tpu_custom_call.1} parent=0
    _
  %s6 = ssub.s32 1, %s4
  %s7 = scalar_select 0, %s6, %s4
  $region1: #{tpu_custom_call.1} parent=0
    #allocation3 [shape = 'u8[16384]{0}', space=vmem, size = 0x4000, scoped, tag = 'output window, operand 0']
    #allocation4 [shape = 's32[2]{0}', space=sflag, size = 0x8, scoped, tag = 'scoped memory for tpu_custom_call.1']
    %8 = vsyncpa [#allocation4], 0
    %s9 = scalar_lea.sflag [#allocation4], 1
    %10 = vsyncpa %s9, 0
    loop: start=0, step=1, limit=4
    $region2: #{tpu_custom_call.1} parent=1 // loop_pre_header
      _
    $region3: #{tpu_custom_call.1} parent=1 // loop_header
      %s12 = sphi 0, %s16
      %p13 = scmp.ge.s32.totalorder %s12, 4
      %s19 = sphi 0, %s31
      %s20 = sphi 0, %s27
      %s21 = sphi 0, %s19
      %s22 = sphi 0, %s20
      %s23 = sphi 0, %s21
      %s24 = sphi 0, %s22
      %s36 = sphi 0, %s38
      %s39 = sphi 0, %s36
      %s40 = sphi 0, %s39
      %s56 = sphi 0, %s40
      %s64 = sphi 0, %s66
      %s67 = sphi 0, %s64
      %s68 = sphi 0, %s67
      %s84 = sphi 0, %s68
      %s92 = sphi 0, %s94
      %s95 = sphi 0, %s92
      %s96 = sphi 0, %s95
      %s112 = sphi 0, %s96
      %s120 = sphi 0, %s122
      %s123 = sphi 0, %s120
      %s124 = sphi 0, %s123
      %s140 = sphi 0, %s124
    $region4: #{tpu_custom_call.1} parent=1 // loop_header_branch
      %15 = sbr.rel (%p13) target = $region8
    $region5: #{tpu_custom_call.1} parent=1 // loop_body
      %s17 = ssub.s32 %s12, 1
      %s18 = ssub.s32 %s12, 2
      %s25 = sadd.s32 1, %s20
      %p26 = scmp.ge.s32.totalorder %s25, 1
      %s27 = scalar_select %p26, 0, %s25
      %s28 = sadd.s32 1, %s19
      %s29 = scalar_select %p26, %s28, %s19
      %p30 = scmp.ge.s32.totalorder %s29, 2
      %s31 = scalar_select %p30, 0, %s29
      %s32 = ssub.s32 %s19, %s31
      %s33 = ssub.s32 %s20, %s27
      %s34 = sor.u32 %s32, %s33
      %p35 = scmp.eq.s32.totalorder %s34, 0
      %s37 = sadd.s32 %s36, 1
      %s38 = scalar_select %p35, %s36, %s37
      %p41 = pneg %p35
      %p42 = scmp.eq.s32.totalorder %s12, 1
      %p43 = por %p41, %p42
      %p44 = scmp.ne.s32.totalorder %s36, %s39
      %p45 = scmp.eq.s32.totalorder %s12, 0
      %p46 = por %p44, %p45
      %p47 = scmp.ne.s32.totalorder %s36, %s39
      %p48 = scmp.eq.s32.totalorder %s17, 1
      %p49 = por %p47, %p48
      %p50 = scmp.ne.s32.totalorder %s39, %s40
      %p51 = scmp.eq.s32.totalorder %s17, 0
      %p52 = por %p50, %p51
      %p53 = scmp.ne.s32.totalorder %s39, %s40
      %p54 = scmp.eq.s32.totalorder %s18, 1
      %p55 = por %p53, %p54
      %p57 = scmp.ne.s32.totalorder %s40, %s56
      %p58 = scmp.eq.s32.totalorder %s18, 0
      %p59 = por %p57, %p58
      %s60 = ssub.s32 %s19, %s31
      %s61 = ssub.s32 %s20, %s27
      %s62 = sor.u32 %s60, %s61
      %p63 = scmp.eq.s32.totalorder %s62, 0
      %s65 = sadd.s32 %s64, 1
      %s66 = scalar_select %p63, %s64, %s65
      %p69 = pneg %p63
      %p70 = scmp.eq.s32.totalorder %s12, 1
      %p71 = por %p69, %p70
      %p72 = scmp.ne.s32.totalorder %s64, %s67
      %p73 = scmp.eq.s32.totalorder %s12, 0
      %p74 = por %p72, %p73
      %p75 = scmp.ne.s32.totalorder %s64, %s67
      %p76 = scmp.eq.s32.totalorder %s17, 1
      %p77 = por %p75, %p76
      %p78 = scmp.ne.s32.totalorder %s67, %s68
      %p79 = scmp.eq.s32.totalorder %s17, 0
      %p80 = por %p78, %p79
      %p81 = scmp.ne.s32.totalorder %s67, %s68
      %p82 = scmp.eq.s32.totalorder %s18, 1
      %p83 = por %p81, %p82
      %p85 = scmp.ne.s32.totalorder %s68, %s84
      %p86 = scmp.eq.s32.totalorder %s18, 0
      %p87 = por %p85, %p86
      %s88 = ssub.s32 %s19, %s31
      %s89 = ssub.s32 %s20, %s27
      %s90 = sor.u32 %s88, %s89
      %p91 = scmp.eq.s32.totalorder %s90, 0
      %s93 = sadd.s32 %s92, 1
      %s94 = scalar_select %p91, %s92, %s93
      %p97 = pneg %p91
      %p98 = scmp.eq.s32.totalorder %s12, 1
      %p99 = por %p97, %p98
      %p100 = scmp.ne.s32.totalorder %s92, %s95
      %p101 = scmp.eq.s32.totalorder %s12, 0
      %p102 = por %p100, %p101
      %p103 = scmp.ne.s32.totalorder %s92, %s95
      %p104 = scmp.eq.s32.totalorder %s17, 1
      %p105 = por %p103, %p104
      %p106 = scmp.ne.s32.totalorder %s95, %s96
      %p107 = scmp.eq.s32.totalorder %s17, 0
      %p108 = por %p106, %p107
      %p109 = scmp.ne.s32.totalorder %s95, %s96
      %p110 = scmp.eq.s32.totalorder %s18, 1
      %p111 = por %p109, %p110
      %p113 = scmp.ne.s32.totalorder %s96, %s112
      %p114 = scmp.eq.s32.totalorder %s18, 0
      %p115 = por %p113, %p114
      %s116 = ssub.s32 %s19, %s31
      %s117 = ssub.s32 %s20, %s27
      %s118 = sor.u32 %s116, %s117
      %p119 = scmp.eq.s32.totalorder %s118, 0
      %s121 = sadd.s32 %s120, 1
      %s122 = scalar_select %p119, %s120, %s121
      %p125 = pneg %p119
      %p126 = scmp.eq.s32.totalorder %s12, 1
      %p127 = por %p125, %p126
      %p128 = scmp.ne.s32.totalorder %s120, %s123
      %p129 = scmp.eq.s32.totalorder %s12, 0
      %p130 = por %p128, %p129
      %p131 = scmp.ne.s32.totalorder %s120, %s123
      %p132 = scmp.eq.s32.totalorder %s17, 1
      %p133 = por %p131, %p132
      %p134 = scmp.ne.s32.totalorder %s123, %s124
      %p135 = scmp.eq.s32.totalorder %s17, 0
      %p136 = por %p134, %p135
      %p137 = scmp.ne.s32.totalorder %s123, %s124
      %p138 = scmp.eq.s32.totalorder %s18, 1
      %p139 = por %p137, %p138
      %p141 = scmp.ne.s32.totalorder %s124, %s140
      %p142 = scmp.eq.s32.totalorder %s18, 0
      %p143 = por %p141, %p142
      %p144 = scmp.le.s32.totalorder 1, %s12
      %p145 = scmp.lt.s32.totalorder %s12, 3
      %p146 = pnand %p144, %p145
      %p147 = pneg %p146
      // Predicated region
      $region9: #{tpu_custom_call.1} parent=5 // pred_check
        _
      $region10: #{tpu_custom_call.1} parent=5 // pred_check_branch
        %149 = sbr.rel (%p146) target = $region12
      $region11: #{tpu_custom_call.1} parent=5 // pred_region
        %s150 = ssub.s32 %s12, 1
      $region12: #{tpu_custom_call.1} parent=5 // pred_fallthru
        _
      %p151 = scmp.lt.s32.totalorder %s12, 2
      // Predicated region
      $region13: #{tpu_custom_call.1} parent=5 // pred_check
        %p152 = pneg %p151
      $region14: #{tpu_custom_call.1} parent=5 // pred_check_branch
        %154 = sbr.rel (%p152) target = $region16
      $region15: #{tpu_custom_call.1} parent=5 // pred_region
        // Predicated region
        $region17: #{tpu_custom_call.1} parent=15 // pred_check
          %p155 = pneg %p46
        $region18: #{tpu_custom_call.1} parent=15 // pred_check_branch
          %157 = sbr.rel (%p155) target = $region20
        $region19: #{tpu_custom_call.1} parent=15 // pred_region
          %s158 = smul.u32 2, %s20
          %p159 = scmp.lt.s32.totalorder %s19, 1
          %s160 = scalar_select %p159, %s19, 1
          %p161 = scmp.lt.s32.totalorder %s158, 1
          %s162 = scalar_select %p161, %s158, 1
          %s163 = smul.addr %s160, 2
          %s164 = sadd.s32 %s162, %s163
          %s165 = smul.addr %s164, 8
          %s166 = scalar_lea.vmem %s0, %s165
          %s167 = smul.u32 2, %s20
        $region20: #{tpu_custom_call.1} parent=15 // pred_fallthru
          _
        // Predicated region
        $region21: #{tpu_custom_call.1} parent=15 // pred_check
          %p168 = pneg %p74
        $region22: #{tpu_custom_call.1} parent=15 // pred_check_branch
          %170 = sbr.rel (%p168) target = $region24
        $region23: #{tpu_custom_call.1} parent=15 // pred_region
          %p171 = scmp.lt.s32.totalorder %s19, 1
          %s172 = scalar_select %p171, %s19, 1
          %p173 = scmp.lt.s32.totalorder %s20, 0
          %s174 = scalar_select %p173, %s20, 0
          %s175 = sadd.s32 %s174, %s172
          %s176 = smul.addr %s175, 8
          %s177 = scalar_lea.vmem %s1, %s176
        $region24: #{tpu_custom_call.1} parent=15 // pred_fallthru
          _
        // Predicated region
        $region25: #{tpu_custom_call.1} parent=15 // pred_check
          %p178 = pneg %p102
        $region26: #{tpu_custom_call.1} parent=15 // pred_check_branch
          %180 = sbr.rel (%p178) target = $region28
        $region27: #{tpu_custom_call.1} parent=15 // pred_region
          %p181 = scmp.lt.s32.totalorder %s19, 1
          %s182 = scalar_select %p181, %s19, 1
          %p183 = scmp.lt.s32.totalorder %s20, 0
          %s184 = scalar_select %p183, %s20, 0
          %s185 = sadd.s32 %s184, %s182
          %s186 = smul.addr %s185, 8
          %s187 = scalar_lea.vmem %s2, %s186
        $region28: #{tpu_custom_call.1} parent=15 // pred_fallthru
          _
      $region16: #{tpu_custom_call.1} parent=5 // pred_fallthru
        _
      %p188 = scmp.le.s32.totalorder 1, %s12
      %p189 = scmp.lt.s32.totalorder %s12, 3
      %p190 = pnand %p188, %p189
      %p191 = pneg %p190
      // Predicated region
      $region29: #{tpu_custom_call.1} parent=5 // pred_check
        _
      $region30: #{tpu_custom_call.1} parent=5 // pred_check_branch
        %193 = sbr.rel (%p190) target = $region32
      $region31: #{tpu_custom_call.1} parent=5 // pred_region
        %s194 = ssub.s32 %s12, 1
        %s195 = smul.u32 2, %s22
        %p196 = scmp.lt.s32.totalorder %s21, 1
        %s197 = scalar_select %p196, %s21, 1
        %p198 = scmp.lt.s32.totalorder %s195, 1
        %s199 = scalar_select %p198, %s195, 1
        %s200 = smul.addr %s197, 2
        %s201 = sadd.s32 %s199, %s200
        %s202 = smul.addr %s201, 8
        %s203 = scalar_lea.vmem %s0, %s202
        %p204 = pneg %p52
        %p205 = pneg %p49
        %p206 = scmp.lt.s32.totalorder %s21, 1
        %s207 = scalar_select %p206, %s21, 1
        %p208 = scmp.lt.s32.totalorder %s22, 0
        %s209 = scalar_select %p208, %s22, 0
        %s210 = sadd.s32 %s209, %s207
        %s211 = smul.addr %s210, 8
        %s212 = scalar_lea.vmem %s1, %s211
        %p213 = pneg %p80
        %p214 = pneg %p77
        %p215 = scmp.lt.s32.totalorder %s21, 1
        %s216 = scalar_select %p215, %s21, 1
        %p217 = scmp.lt.s32.totalorder %s22, 0
        %s218 = scalar_select %p217, %s22, 0
        %s219 = sadd.s32 %s218, %s216
        %s220 = smul.addr %s219, 8
        %s221 = scalar_lea.vmem %s2, %s220
        %p222 = pneg %p108
        %p223 = pneg %p105
        %p224 = pneg %p136
        %p225 = pneg %p133
        %s226 = sand.u32 %s123, 1
        %s227 = scalar_lea.sflag [#allocation4], %s226
        %s228 = sand.u32 %s123, 1
        %s229 = smul.addr %s228, 16
        %s230 = scalar_lea.vmem [#allocation3], %s229
        %s231 = smul.u32 2, %s22
        %p232 = scmp.lt.s32.totalorder %s21, 1
        %s233 = scalar_select %p232, %s21, 1
        %p234 = scmp.lt.s32.totalorder %s231, 1
        %s235 = scalar_select %p234, %s231, 1
        %s236 = smul.addr %s233, 2
        %s237 = sadd.s32 %s235, %s236
        %s238 = smul.addr %s237, 8
        %s239 = scalar_lea.vmem %s0, %s238
        %s240 = smul.u32 2, %s22
        %p241 = scmp.lt.s32.totalorder %s21, 1
        %s242 = scalar_select %p241, %s21, 1
        %p243 = scmp.lt.s32.totalorder %s22, 0
        %s244 = scalar_select %p243, %s22, 0
        %s245 = sadd.s32 %s244, %s242
        %s246 = smul.addr %s245, 8
        %s247 = scalar_lea.vmem %s1, %s246
        %p248 = scmp.lt.s32.totalorder %s21, 1
        %s249 = scalar_select %p248, %s21, 1
        %p250 = scmp.lt.s32.totalorder %s22, 0
        %s251 = scalar_select %p250, %s22, 0
        %s252 = sadd.s32 %s251, %s249
        %s253 = smul.addr %s252, 8
        %s254 = scalar_lea.vmem %s2, %s253
        %s255 = smul.u32 2, %s22
        %v256 = vld [vmem:[%s247] sm:$0xff]
        %vm257 = vcmask 64512
        %258 = vst.msk [vmem:[#allocation2] sm:$0xff] %vm257, %v256
        %v259 = vld [vmem:[%s254] sm:$0xff]
        %260 = vst.msk [vmem:[#allocation2 + $0x18] sm:$0xff] %vm257, %v259
        %v261 = vld [vmem:[%s239] sm:$0xff]
        %v262 = vld [vmem:[%s239 + $0x8] sm:$0xff]
        %263 = vst.msk [vmem:[#allocation2 + $0x8] sm:$0xff] %vm257, %v261
        %264 = vst.msk [vmem:[#allocation2 + $0x10] sm:$0xff] %vm257, %v262
        %v265 = vld [vmem:[#allocation2] sm:$0xff]
        %v266 = vld [vmem:[#allocation2 + $0x8] sm:$0xff]
        %v267 = vld [vmem:[#allocation2 + $0x10] sm:$0xff]
        %v268 = vld [vmem:[#allocation2 + $0x18] sm:$0xff]
        %v269 = vmul.f32 %v265, -0.5
        %v270 = vmul.f32 %v266, -0.5
        %v271 = vmul.f32 %v267, -0.5
        %v272 = vmul.f32 %v266, 0.5
        %v273 = vmul.f32 %v267, 0.5
        %v274 = vmul.f32 %v268, 0.5
        %vm278 = vcmask 1045504
        %v279 = vrot.slane %v272, 2
        %v280 = vrot.slane %v273, 2
        %v281 = vsel %vm278, %v279, %v280
        %v282 = vrot.slane %v274, 2
        %v283 = vsel %vm278, %v280, %v282
        %v287 = vadd.f32 %v269, %v279
        %v288 = vadd.f32 %v270, %v281
        %v289 = vadd.f32 %v271, %v283
        %v290 = vmul.f32 %v266, -2.0
        %v291 = vmul.f32 %v267, -2.0
        %vm294 = vcmask 1046528
        %v295 = vrot.slane %v290, 1
        %v296 = vrot.slane %v291, 1
        %v297 = vsel %vm294, %v295, %v296
        %v301 = vadd.f32 %v265, %v295
        %v302 = vadd.f32 %v266, %v297
        %v303 = vadd.f32 %v267, %v296
        %v307 = vrot.slane %v266, 2
        %v308 = vrot.slane %v267, 2
        %v309 = vsel %vm278, %v307, %v308
        %v310 = vrot.slane %v268, 2
        %v311 = vsel %vm278, %v308, %v310
        %v315 = vadd.f32 %v301, %v307
        %v316 = vadd.f32 %v302, %v309
        %v317 = vadd.f32 %v303, %v311
        %vm321 = vcmask 1040384
        %v322 = vrot.slane %v287, 7
        %v323 = vrot.slane %v288, 7
        %v324 = vsel %vm321, %v322, %v323
        %v325 = vrot.slane %v289, 7
        %v326 = vsel %vm321, %v323, %v325
        %327 = vrot.lane.b32.xlu0 %v324, 8
        %v328 = vpop.permute.xlu0 %327
        %329 = vrot.lane.b32.xlu0 %v326, 8
        %v330 = vpop.permute.xlu0 %329
        %v336 = vrot.slane %v315, 7
        %v337 = vrot.slane %v316, 7
        %v338 = vsel %vm321, %v336, %v337
        %v339 = vrot.slane %v317, 7
        %v340 = vsel %vm321, %v337, %v339
        %341 = vrot.lane.b32.xlu0 %v338, 16
        %v342 = vpop.permute.xlu0 %341
        %343 = vrot.lane.b32.xlu0 %v340, 16
        %v344 = vpop.permute.xlu0 %343
        %v347 = vsel %vm257, %v266, %v328
        %v348 = vsel %vm257, %v267, %v330
        %vm349 = vcmask 130048
        %v350 = vsel %vm349, %v347, %v342
        %v351 = vsel %vm349, %v348, %v344
        %vm352 = vcmask 195584
        %353 = vst.msk [vmem:[%s230] sm:$0xff] %vm352, %v350
        %354 = vst.msk [vmem:[%s230 + $0x8] sm:$0xff] %vm352, %v351
        %s355 = sand.u32 %s123, 1
        %s356 = scalar_lea.sflag [#allocation4], %s355
        %s357 = sand.u32 %s123, 1
        %s358 = smul.addr %s357, 16
        %s359 = scalar_lea.vmem [#allocation3], %s358
        // Predicated region
        $region33: #{tpu_custom_call.1} parent=31 // pred_check
          %p360 = pneg %p133
        $region34: #{tpu_custom_call.1} parent=31 // pred_check_branch
          %362 = sbr.rel (%p360) target = $region36
        $region35: #{tpu_custom_call.1} parent=31 // pred_region
          %s363 = smul.u32 2, %s22
          %s365 = ssub.s32 256, 256
          %366 = vsyncadd %s356, %s365
          %s367 = smul.addr %s21, 2
          %s368 = sadd.s32 %s363, %s367
          %s369 = smul.addr %s368, 128
          %s370 = scalar_lea.hbm %s3, %s369
          %s371 = sshll.u32 %s359, 4
          %s372 = int_to_ptr.vmem [resolvable:$true] %s371
          %377 = dma.vmem_to_hbm [thread:$0]  %s372, 256, %s370, %s356, 128, 128, 8
        $region36: #{tpu_custom_call.1} parent=31 // pred_fallthru
          _
      $region32: #{tpu_custom_call.1} parent=5 // pred_fallthru
        _
      %p378 = scmp.le.s32.totalorder 2, %s12
      // Predicated region
      $region37: #{tpu_custom_call.1} parent=5 // pred_check
        %p379 = pneg %p378
      $region38: #{tpu_custom_call.1} parent=5 // pred_check_branch
        %381 = sbr.rel (%p379) target = $region40
      $region39: #{tpu_custom_call.1} parent=5 // pred_region
        %s382 = ssub.s32 %s12, 2
        // Predicated region
        $region41: #{tpu_custom_call.1} parent=39 // pred_check
          %p383 = pneg %p139
        $region42: #{tpu_custom_call.1} parent=39 // pred_check_branch
          %385 = sbr.rel (%p383) target = $region44
        $region43: #{tpu_custom_call.1} parent=39 // pred_region
          %s386 = sand.u32 %s124, 1
          %s387 = scalar_lea.sflag [#allocation4], %s386
          %s388 = sand.u32 %s124, 1
          %s389 = smul.addr %s388, 16
          %s390 = scalar_lea.vmem [#allocation3], %s389
          %391 = dma.done %s387, 256
        $region44: #{tpu_custom_call.1} parent=39 // pred_fallthru
          _
      $region40: #{tpu_custom_call.1} parent=5 // pred_fallthru
        _
    $region6: #{tpu_custom_call.1} parent=1 // loop_footer
      %s16 = sadd.s32 1, %s12
    $region7: #{tpu_custom_call.1} parent=1 // loop_footer_branch
      %11 = sbr.rel target = $region3
    $region8: #{tpu_custom_call.1} parent=1 // loop_exit
      _
    %392 = vsyncpa [#allocation4], 1
    %s393 = scalar_lea.sflag [#allocation4], 1
    %394 = vsyncpa %s393, 1

</llo_original>
